<compile_context>
chip_gen: v7x
topology: tpu7x:2x2x1
jax: 0.10.0
libtpu: 0.0.40
codegen_flags: <defaults>
</compile_context>

<pallas_src>
import functools

import jax
import jax.numpy as jnp
from jax import lax
from jax.experimental import pallas as pl
from jax.experimental.pallas import tpu as pltpu

_EPS = 1e-6                 # F.pairwise_distance default eps (added to the difference)
_LANES = 128
_TARGET_STEPS = 4           # aim for ~4 grid steps: megacore sharding + pipeline overlap
_MIN_TILE_BYTES = 1 << 20   # keep >= ~1 MiB of streamed input per tile (roofline knee)


def _rdown(x, m=_LANES):
    return (int(x) // m) * m


def _rup(x, m=_LANES):
    return ((int(x) + m - 1) // m) * m


# --------------------------------------------------------------------------- #
# Kernel: per-row squared L2 distances, accumulated over feature tiles.
# --------------------------------------------------------------------------- #
def _pairwise_sq_kernel(a_ref, p_ref, n_ref, pos_ref, neg_ref):
    """Grid = (batch tiles [parallel], feature tiles [arbitrary]).

    Outputs are lane-dense (1, block_rows) f32 slabs whose block index ignores
    the feature axis, so they stay resident in VMEM and act as accumulators.
    """
    k = pl.program_id(1)

    a = a_ref[...].astype(jnp.float32)
    p = p_ref[...].astype(jnp.float32)
    n = n_ref[...].astype(jnp.float32)

    dp = a - p + _EPS
    dn = a - n + _EPS

    # Reduce over the feature dim on the (otherwise idle) MXU and land the
    # result directly lane-dense as (1, block_rows): ones(1, D) . dsq^T.
    # Avoids the cross-lane XLU reduce and the (rows,1)->(1,rows) relayout.
    ones = jnp.ones((1, a.shape[-1]), jnp.float32)
    dims = (((1,), (1,)), ((), ()))
    pos_part = lax.dot_general(ones, dp * dp, dims,
                               precision=lax.Precision.HIGHEST,
                               preferred_element_type=jnp.float32)
    neg_part = lax.dot_general(ones, dn * dn, dims,
                               precision=lax.Precision.HIGHEST,
                               preferred_element_type=jnp.float32)

    @pl.when(k == 0)
    def _():
        pos_ref[...] = jnp.zeros_like(pos_ref)
        neg_ref[...] = jnp.zeros_like(neg_ref)

    pos_ref[...] += pos_part
    neg_ref[...] += neg_part


# --------------------------------------------------------------------------- #
# Tiling policy (VMEM-capacity aware, multi-step grid, optional D tiling).
# --------------------------------------------------------------------------- #
def _choose_tiling(B, D, itemsize, block_rows, d_block):
    try:
        cap = int(pltpu.get_tpu_info().vmem_capacity_bytes)
    except Exception:
        cap = 64 << 20      # conservative fallback (covers v7x's 64 MiB parts)

    # Working-set budget: ~40% of physical VMEM, capped at 48 MiB.
    #   -> ~25 MiB on 64 MiB parts (v7x), 48 MiB on 128 MiB parts (v5e/v6e).
    budget = min(48 << 20, (2 * cap) // 5)

    # Per-element bytes of the streamed working set:
    #   3 inputs x 2 pipeline buffers (native dtype) + ~5 f32 temporaries
    #   (the a/p/n upcasts plus dp and dn).
    per_col = 3 * 2 * itemsize + 5 * 4

    # ----- batch tile ------------------------------------------------------ #
    if block_rows is None:
        if B <= _LANES:
            # Lane-dense (1, block_rows) outputs need 128-row multiples for a
            # multi-tile grid; batches <= 128 run as a single tile.
            # NOTE: D < 128 under-fills vreg lanes / DMAs; acceptable for the
            # small shapes this trainer uses.
            block_rows = B
        else:
            fit_rows = max(_LANES, _rdown(budget // (per_col * D)))     # VMEM cap
            split_rows = max(_LANES, _rdown(-(-B // _TARGET_STEPS)))    # ~4 steps
            bw_rows = _rup(-(-_MIN_TILE_BYTES // (D * itemsize)))       # >=1 MiB/tile
            two_step_cap = _rdown(B - 1)                                # >=2 steps
            block_rows = min(fit_rows, two_step_cap, max(split_rows, bw_rows))
    else:
        block_rows = min(int(block_rows), B)
        if block_rows < B:
            assert block_rows % _LANES == 0, \
                "multi-tile block_rows must be a multiple of 128"

    # ----- feature tile (reduction axis) ----------------------------------- #
    if d_block is None:
        d_block = D
        if per_col * D * block_rows > budget and D % _LANES == 0:
            # Very large D: tile the feature axis so the working set stays in
            # budget without shrinking the 128-row batch tile.
            max_d = max(_LANES, _rdown(budget // (per_col * block_rows)))
            d_block = _LANES
            for cand in range(min(max_d, D), _LANES - 1, -_LANES):
                if D % cand == 0:
                    d_block = cand
                    break
        # TODO(synk): huge D that is not a multiple of 128 keeps the full-D
        # block (a masked ragged feature tail would be needed to tile it).
    else:
        d_block = min(int(d_block), D)
    if d_block < D:
        assert d_block % _LANES == 0 and D % d_block == 0, \
            "feature tile must be a multiple of 128 and divide D"

    # Scoped-VMEM limit: covers the chosen footprint, stays well under physical.
    vmem_limit = min((3 * cap) // 4, budget + (32 << 20))
    vmem_limit = int(min((9 * cap) // 10,
                         max(vmem_limit,
                             per_col * block_rows * d_block + (2 << 20))))
    return int(block_rows), int(d_block), vmem_limit


def _pairwise_sq_impl(anchor, pos, neg, block_rows, d_block):
    B, D = anchor.shape
    br, db, vmem_limit = _choose_tiling(B, D, anchor.dtype.itemsize,
                                        block_rows, d_block)

    # Ragged last batch tile instead of host-side padding: the boundary input
    # DMA is clipped and the garbage tail lanes are sliced off by the caller
    # before any reduction.
    grid = (pl.cdiv(B, br), pl.cdiv(D, db))

    in_spec = pl.BlockSpec((br, db), lambda i, k: (i, k))
    out_spec = pl.BlockSpec((1, br), lambda i, k: (0, i))   # lane-dense, k-resident

    pos_sq, neg_sq = pl.pallas_call(
        _pairwise_sq_kernel,
        out_shape=(jax.ShapeDtypeStruct((1, B), jnp.float32),
                   jax.ShapeDtypeStruct((1, B), jnp.float32)),
        grid_spec=pltpu.PrefetchScalarGridSpec(
            num_scalar_prefetch=0,
            grid=grid,
            in_specs=[in_spec, in_spec, in_spec],
            out_specs=[out_spec, out_spec],
        ),
        compiler_params=pltpu.CompilerParams(
            dimension_semantics=("parallel", "arbitrary"),
            vmem_limit_bytes=vmem_limit,
        ),
    )(anchor, pos, neg)
    return pos_sq[0], neg_sq[0]


# --------------------------------------------------------------------------- #
# custom_vjp so the loss is usable for training (backward is plain JAX).
# --------------------------------------------------------------------------- #
@functools.partial(jax.custom_vjp, nondiff_argnums=(3, 4))
def _pairwise_sq(anchor, pos, neg, block_rows, d_block):
    """Returns (pos_sq, neg_sq): per-row squared L2 distances, shape (B,), f32."""
    return _pairwise_sq_impl(anchor, pos, neg, block_rows, d_block)


def _pairwise_sq_fwd(anchor, pos, neg, block_rows, d_block):
    out = _pairwise_sq_impl(anchor, pos, neg, block_rows, d_block)
    return out, (anchor, pos, neg)


def _pairwise_sq_bwd(block_rows, d_block, residuals, cotangents):
    del block_rows, d_block
    anchor, pos, neg = residuals
    g_pos, g_neg = cotangents                                   # (B,) each
    a = anchor.astype(jnp.float32)
    p = pos.astype(jnp.float32)
    n = neg.astype(jnp.float32)
    dp = a - p + _EPS
    dn = a - n + _EPS
    gp = (2.0 * g_pos.astype(jnp.float32))[:, None]
    gn = (2.0 * g_neg.astype(jnp.float32))[:, None]
    da = gp * dp + gn * dn
    return (da.astype(anchor.dtype),
            (-gp * dp).astype(pos.dtype),
            (-gn * dn).astype(neg.dtype))


_pairwise_sq.defvjp(_pairwise_sq_fwd, _pairwise_sq_bwd)


# --------------------------------------------------------------------------- #
# Public wrapper (matches ContrastiveLoss.forward semantics).
# --------------------------------------------------------------------------- #
def contrastive_loss(anchor, pos, neg, margin=1.0, block_rows=None, d_block=None):
    """Pallas ContrastiveLoss forward.  anchor/pos/neg: (B, D), f32 or bf16."""
    assert anchor.ndim == 2 and anchor.shape == pos.shape == neg.shape
    pos_sq, neg_sq = _pairwise_sq(anchor, pos, neg, block_rows, d_block)

    pos_dis = jnp.sqrt(pos_sq)
    neg_dis = jnp.sqrt(neg_sq)

    # Tiny O(B) epilogue in plain JAX.  pos_loss uses the squared sums directly
    # (== mean(pos_dis**2) without the sqrt->square roundtrip).
    pos_loss = jnp.mean(pos_sq)
    neg_loss = jnp.mean(jnp.maximum(margin - neg_dis, 0.0) ** 2)
    loss = (pos_loss + neg_loss) * 0.5

    # TODO(synk): PyTorch returns pos_loss.item()/neg_loss.item() as host
    # floats; they stay JAX scalars here (caller can float() them).
    stats = {
        "pos_dis": pos_dis,
        "neg_dis": neg_dis,
        "pos_loss": pos_loss,
        "neg_loss": neg_loss,
    }
    return loss, stats


# --------------------------------------------------------------------------- #
# Reference + tests
# --------------------------------------------------------------------------- #
def _reference(anchor, pos, neg, margin=1.0):
    a = anchor.astype(jnp.float32)
    p = pos.astype(jnp.float32)
    n = neg.astype(jnp.float32)
    pos_dis = jnp.sqrt(jnp.sum((a - p + _EPS) ** 2, axis=-1))
    neg_dis = jnp.sqrt(jnp.sum((a - n + _EPS) ** 2, axis=-1))
    pos_loss = jnp.mean(pos_dis ** 2)
    neg_loss = jnp.mean(jnp.maximum(margin - neg_dis, 0.0) ** 2)
    return (pos_loss + neg_loss) / 2, pos_dis, neg_dis, pos_loss, neg_loss


def _assert_close(x, y, name, rtol=2e-3, atol=1e-3):
    assert jnp.allclose(x, y, rtol=rtol, atol=atol), (name, x, y)


def _check(a, p, n, margin, name, **kw):
    loss, stats = contrastive_loss(a, p, n, margin=margin, **kw)
    jax.block_until_ready(loss)
    r_loss, r_pd, r_nd, r_pl, r_nl = _reference(a, p, n, margin)
    _assert_close(loss, r_loss, name + ":loss")
    _assert_close(stats["pos_dis"], r_pd, name + ":pos_dis")
    _assert_close(stats["neg_dis"], r_nd, name + ":neg_dis")
    _assert_close(stats["pos_loss"], r_pl, name + ":pos_loss")
    _assert_close(stats["neg_loss"], r_nl, name + ":neg_loss")
    return loss, stats


if __name__ == "__main__":
    margin = 1.0
    keys = jax.random.split(jax.random.PRNGKey(0), 8)

    # Case 1: small single-tile batch (B <= 128), small D.
    B, D = 8, 32
    a = jax.random.normal(keys[0], (B, D), dtype=jnp.float32)
    p = a + 0.1 * jax.random.normal(keys[1], (B, D), dtype=jnp.float32)
    n = jax.random.normal(keys[2], (B, D), dtype=jnp.float32)
    _, st = _check(a, p, n, margin, "small")
    _ = float(st["pos_loss"])   # mirrors PyTorch .item()
    _ = float(st["neg_loss"])

    # Gradient check through the custom VJP (training path).
    g_k = jax.grad(lambda a_, p_, n_: contrastive_loss(a_, p_, n_, margin=margin)[0],
                   argnums=(0, 1, 2))(a, p, n)
    g_r = jax.grad(lambda a_, p_, n_: _reference(a_, p_, n_, margin)[0],
                   argnums=(0, 1, 2))(a, p, n)
    jax.block_until_ready(g_k)
    for gk, gr in zip(g_k, g_r):
        _assert_close(gk, gr, "grad")

    # Case 2: ragged multi-tile batch, no host-side padding (grid rows = cdiv(200,128) = 2).
    B2, D2 = 200, 32
    a2 = jax.random.normal(keys[3], (B2, D2), dtype=jnp.float32)
    p2 = a2 + 0.05 * jax.random.normal(keys[4], (B2, D2), dtype=jnp.float32)
    n2 = jax.random.normal(keys[5], (B2, D2), dtype=jnp.float32)
    _check(a2, p2, n2, margin, "ragged", block_rows=128)

    # Case 3: feature-axis (reduction) tiling path + bf16 streaming, forced small tiles.
    B3, D3 = 256, 256
    a3 = jax.random.normal(keys[6], (B3, D3), dtype=jnp.float32)
    p3 = a3 + 0.05 * jax.random.normal(keys[7], (B3, D3), dtype=jnp.float32)
    n3 = jax.random.normal(keys[0], (B3, D3), dtype=jnp.float32)
    a3, p3, n3 = (x.astype(jnp.bfloat16) for x in (a3, p3, n3))
    _check(a3, p3, n3, margin, "dtiled-bf16", block_rows=128, d_block=128)

    print("KERNEL_OK")
</pallas_src>

<mosaic_0001>
module attributes {stable_mosaic.version = 11 : i64} {
  func.func @_pairwise_sq_kernel(%arg0: i32, %arg1: i32, %arg2: memref<8x32xf32, #tpu.memory_space<vmem>>, %arg3: memref<8x32xf32, #tpu.memory_space<vmem>>, %arg4: memref<8x32xf32, #tpu.memory_space<vmem>>, %arg5: memref<1x8xf32, #tpu.memory_space<vmem>>, %arg6: memref<1x8xf32, #tpu.memory_space<vmem>>) attributes {dimension_semantics = [#tpu.dimension_semantics<parallel>, #tpu.dimension_semantics<arbitrary>], iteration_bounds = array<i64: 1, 1>, scalar_prefetch = 0 : i64, scratch_operands = 0 : i64, tpu.core_type = #tpu.core_type<tc>, window_params = [{transform_indices = @transform_0, window_bounds = array<i64: 8, 32>}, {transform_indices = @transform_1, window_bounds = array<i64: 8, 32>}, {transform_indices = @transform_2, window_bounds = array<i64: 8, 32>}, {transform_indices = @transform_3, window_bounds = array<i64: 1, 8>}, {transform_indices = @transform_4, window_bounds = array<i64: 1, 8>}]} {
    %c0 = arith.constant 0 : index
    %c0_0 = arith.constant 0 : index
    %0 = vector.load %arg2[%c0, %c0_0] : memref<8x32xf32, #tpu.memory_space<vmem>>, vector<8x32xf32>
    %c0_1 = arith.constant 0 : index
    %c0_2 = arith.constant 0 : index
    %1 = vector.load %arg3[%c0_1, %c0_2] : memref<8x32xf32, #tpu.memory_space<vmem>>, vector<8x32xf32>
    %c0_3 = arith.constant 0 : index
    %c0_4 = arith.constant 0 : index
    %2 = vector.load %arg4[%c0_3, %c0_4] : memref<8x32xf32, #tpu.memory_space<vmem>>, vector<8x32xf32>
    %3 = arith.subf %0, %1 : vector<8x32xf32>
    %cst = arith.constant 9.99999997E-7 : f32
    %4 = vector.broadcast %cst : f32 to vector<8x32xf32>
    %5 = arith.addf %3, %4 : vector<8x32xf32>
    %6 = arith.subf %0, %2 : vector<8x32xf32>
    %cst_5 = arith.constant 9.99999997E-7 : f32
    %7 = vector.broadcast %cst_5 : f32 to vector<8x32xf32>
    %8 = arith.addf %6, %7 : vector<8x32xf32>
    %cst_6 = arith.constant 1.000000e+00 : f32
    %9 = vector.broadcast %cst_6 : f32 to vector<1x32xf32>
    %10 = arith.mulf %5, %5 : vector<8x32xf32>
    %cst_7 = arith.constant dense<0.000000e+00> : vector<1x8xf32>
    %11 = tpu.matmul %9, %10, %cst_7 {dimension_numbers = #tpu.dot_dimension_numbers<[1], [1], [0], [0], [0, 0, 1, 0], [], []>, precision = #tpu.contract_precision<fp32>} : vector<1x32xf32>, vector<8x32xf32>, vector<1x8xf32> -> vector<1x8xf32>
    %12 = arith.mulf %8, %8 : vector<8x32xf32>
    %cst_8 = arith.constant dense<0.000000e+00> : vector<1x8xf32>
    %13 = tpu.matmul %9, %12, %cst_8 {dimension_numbers = #tpu.dot_dimension_numbers<[1], [1], [0], [0], [0, 0, 1, 0], [], []>, precision = #tpu.contract_precision<fp32>} : vector<1x32xf32>, vector<8x32xf32>, vector<1x8xf32> -> vector<1x8xf32>
    %c0_i32 = arith.constant 0 : i32
    %14 = arith.cmpi eq, %arg1, %c0_i32 : i32
    %15 = arith.extui %14 : i1 to i32
    %c0_i32_9 = arith.constant 0 : i32
    %16 = arith.cmpi ne, %15, %c0_i32_9 : i32
    scf.if %16 {
      %cst_18 = arith.constant 0.000000e+00 : f32
      %23 = vector.broadcast %cst_18 : f32 to vector<1x8xf32>
      %c0_19 = arith.constant 0 : index
      %c0_20 = arith.constant 0 : index
      %24 = vector.load %arg5[%c0_19, %c0_20] : memref<1x8xf32, #tpu.memory_space<vmem>>, vector<1x8xf32>
      tpu.vector_store %arg5[%c0_19, %c0_20], %23 {strides = array<i32>} : memref<1x8xf32, #tpu.memory_space<vmem>>, vector<1x8xf32>,
      %cst_21 = arith.constant 0.000000e+00 : f32
      %25 = vector.broadcast %cst_21 : f32 to vector<1x8xf32>
      %c0_22 = arith.constant 0 : index
      %c0_23 = arith.constant 0 : index
      %26 = vector.load %arg6[%c0_22, %c0_23] : memref<1x8xf32, #tpu.memory_space<vmem>>, vector<1x8xf32>
      tpu.vector_store %arg6[%c0_22, %c0_23], %25 {strides = array<i32>} : memref<1x8xf32, #tpu.memory_space<vmem>>, vector<1x8xf32>,
    } else {
    }
    %c0_10 = arith.constant 0 : index
    %c0_11 = arith.constant 0 : index
    %17 = vector.load %arg5[%c0_10, %c0_11] : memref<1x8xf32, #tpu.memory_space<vmem>>, vector<1x8xf32>
    %18 = arith.addf %17, %11 : vector<1x8xf32>
    %c0_12 = arith.constant 0 : index
    %c0_13 = arith.constant 0 : index
    %19 = vector.load %arg5[%c0_12, %c0_13] : memref<1x8xf32, #tpu.memory_space<vmem>>, vector<1x8xf32>
    tpu.vector_store %arg5[%c0_12, %c0_13], %18 {strides = array<i32>} : memref<1x8xf32, #tpu.memory_space<vmem>>, vector<1x8xf32>,
    %c0_14 = arith.constant 0 : index
    %c0_15 = arith.constant 0 : index
    %20 = vector.load %arg6[%c0_14, %c0_15] : memref<1x8xf32, #tpu.memory_space<vmem>>, vector<1x8xf32>
    %21 = arith.addf %20, %13 : vector<1x8xf32>
    %c0_16 = arith.constant 0 : index
    %c0_17 = arith.constant 0 : index
    %22 = vector.load %arg6[%c0_16, %c0_17] : memref<1x8xf32, #tpu.memory_space<vmem>>, vector<1x8xf32>
    tpu.vector_store %arg6[%c0_16, %c0_17], %21 {strides = array<i32>} : memref<1x8xf32, #tpu.memory_space<vmem>>, vector<1x8xf32>,
    return
  }
  func.func @transform_0(%arg0: i32, %arg1: i32) -> (i32, i32) {
    %c0_i32 = arith.constant 0 : i32
    return %arg0, %arg1 : i32, i32
  }
  func.func @transform_1(%arg0: i32, %arg1: i32) -> (i32, i32) {
    %c0_i32 = arith.constant 0 : i32
    return %arg0, %arg1 : i32, i32
  }
  func.func @transform_2(%arg0: i32, %arg1: i32) -> (i32, i32) {
    %c0_i32 = arith.constant 0 : i32
    return %arg0, %arg1 : i32, i32
  }
  func.func @transform_3(%arg0: i32, %arg1: i32) -> (i32, i32) {
    %c0_i32 = arith.constant 0 : i32
    %c0_i32_0 = arith.constant 0 : i32
    return %c0_i32, %arg0 : i32, i32
  }
  func.func @transform_4(%arg0: i32, %arg1: i32) -> (i32, i32) {
    %c0_i32 = arith.constant 0 : i32
    %c0_i32_0 = arith.constant 0 : i32
    return %c0_i32, %arg0 : i32, i32
  }
}

</mosaic_0001>

<llo_original>
// kernel: tpu_custom_call.1
$region0: #{tpu_custom_call.1}
  #allocation0 [shape = 'u32[]', space=smem, size = 0x4, offset = 0x4, fixed_abs, tag = 'smem constant byte address 0x4 - core index']
  #allocation1 [shape = 'u32[144,128]{1,0:T(1,128)}', space=vmem, size = 0x12000, scoped, tag = 'internal scratch']
  %s0 = inlined_call_operand.hbm [shape: f32[8,32], index: 0, kind: input, shape index: {}]
  %s1 = inlined_call_operand.hbm [shape: f32[8,32], index: 1, kind: input, shape index: {}]
  %s2 = inlined_call_operand.hbm [shape: f32[8,32], index: 2, kind: input, shape index: {}]
  %s3 = inlined_call_operand.hbm [shape: f32[1,8], index: 3, kind: output, shape index: {0}]
  %s4 = inlined_call_operand.hbm [shape: f32[1,8], index: 4, kind: output, shape index: {1}]
  %5 = xla_tuple %s3, %s4
  %s6 = sld [smem:[#allocation0]]
  $region46: #{tpu_custom_call.1} parent=0
    _
  %s8 = ssub.s32 1, %s6
  %s9 = scalar_select 0, %s8, %s6
  $region1: #{tpu_custom_call.1} parent=0
    #allocation2 [shape = 'u8[4096]{0}', space=vmem, size = 0x1000, scoped, tag = 'input window, operand 0, single buffered']
    #allocation3 [shape = 's32[1]{0}', space=sflag, size = 0x4, scoped, tag = 'scoped memory for tpu_custom_call.1']
    #allocation4 [shape = 's32[1]{0}', space=sflag, size = 0x4, scoped, tag = 'scoped memory for tpu_custom_call.1']
    #allocation5 [shape = 'u8[4096]{0}', space=vmem, size = 0x1000, scoped, tag = 'input window, operand 1, single buffered']
    #allocation6 [shape = 's32[1]{0}', space=sflag, size = 0x4, scoped, tag = 'scoped memory for tpu_custom_call.1']
    #allocation7 [shape = 'u8[4096]{0}', space=vmem, size = 0x1000, scoped, tag = 'input window, operand 2, single buffered']
    #allocation8 [shape = 'u8[512]{0}', space=vmem, size = 0x400, scoped, tag = 'output window, operand 0, single buffered']
    #allocation9 [shape = 'u8[512]{0}', space=vmem, size = 0x400, scoped, tag = 'output window, operand 1, single buffered']
    #allocation10 [shape = 's32[1]{0}', space=sflag, size = 0x4, scoped, tag = 'scoped memory for tpu_custom_call.1']
    %10 = vsyncpa [#allocation3], 0
    %11 = vsyncpa [#allocation6], 0
    %12 = vsyncpa [#allocation4], 0
    %13 = vsyncpa [#allocation10], 0
    // Predicated region
    $region2: #{tpu_custom_call.1} parent=1 // pred_check
      _
    $region3: #{tpu_custom_call.1} parent=1 // pred_check_branch
      %15 = sbr.rel (0) target = $region5
    $region4: #{tpu_custom_call.1} parent=1 // pred_region
      %s17 = ssub.s32 128, 128
      %18 = vsyncadd [#allocation3], %s17
      %s20 = sshll.u32 [#allocation2], 4
      %s21 = int_to_ptr.vmem [resolvable:$true] %s20
      %23 = dma.hbm_to_vmem [thread:$0]  %s0, 128, %s21, [#allocation3]
    $region5: #{tpu_custom_call.1} parent=1 // pred_fallthru
      _
    // Predicated region
    $region6: #{tpu_custom_call.1} parent=1 // pred_check
      _
    $region7: #{tpu_custom_call.1} parent=1 // pred_check_branch
      %25 = sbr.rel (0) target = $region9
    $region8: #{tpu_custom_call.1} parent=1 // pred_region
      %s27 = ssub.s32 128, 128
      %28 = vsyncadd [#allocation6], %s27
      %s30 = sshll.u32 [#allocation5], 4
      %s31 = int_to_ptr.vmem [resolvable:$true] %s30
      %33 = dma.hbm_to_vmem [thread:$0]  %s1, 128, %s31, [#allocation6]
    $region9: #{tpu_custom_call.1} parent=1 // pred_fallthru
      _
    // Predicated region
    $region10: #{tpu_custom_call.1} parent=1 // pred_check
      _
    $region11: #{tpu_custom_call.1} parent=1 // pred_check_branch
      %35 = sbr.rel (0) target = $region13
    $region12: #{tpu_custom_call.1} parent=1 // pred_region
      %s37 = ssub.s32 128, 128
      %38 = vsyncadd [#allocation6], %s37
      %s40 = sshll.u32 [#allocation7], 4
      %s41 = int_to_ptr.vmem [resolvable:$true] %s40
      %43 = dma.hbm_to_vmem [thread:$0]  %s2, 128, %s41, [#allocation6]
    $region13: #{tpu_custom_call.1} parent=1 // pred_fallthru
      _
    // Predicated region
    $region14: #{tpu_custom_call.1} parent=1 // pred_check
      _
    $region15: #{tpu_custom_call.1} parent=1 // pred_check_branch
      %45 = sbr.rel (0) target = $region17
    $region16: #{tpu_custom_call.1} parent=1 // pred_region
      %46 = dma.done [#allocation3], 128
    $region17: #{tpu_custom_call.1} parent=1 // pred_fallthru
      _
    // Predicated region
    $region18: #{tpu_custom_call.1} parent=1 // pred_check
      _
    $region19: #{tpu_custom_call.1} parent=1 // pred_check_branch
      %48 = sbr.rel (0) target = $region21
    $region20: #{tpu_custom_call.1} parent=1 // pred_region
      %49 = dma.done [#allocation6], 128
    $region21: #{tpu_custom_call.1} parent=1 // pred_fallthru
      _
    // Predicated region
    $region22: #{tpu_custom_call.1} parent=1 // pred_check
      _
    $region23: #{tpu_custom_call.1} parent=1 // pred_check_branch
      %51 = sbr.rel (0) target = $region25
    $region24: #{tpu_custom_call.1} parent=1 // pred_region
      %52 = dma.done [#allocation6], 128
    $region25: #{tpu_custom_call.1} parent=1 // pred_fallthru
      _
    %v53 = vld [vmem:[#allocation2] sm:$0xff]
    %v54 = vld [vmem:[#allocation5] sm:$0xff]
    %v55 = vld [vmem:[#allocation7] sm:$0xff]
    %v56 = vsub.f32 %v53, %v54
    %v57 = vadd.f32 %v56, 1e-06
    %v58 = vsub.f32 %v53, %v55
    %v59 = vadd.f32 %v58, 1e-06
    %v60 = vmul.f32 %v57, %v57
    %vm61 = vcmask 261120
    %v63 = vsel %vm61, 1.0, 0
    %v66 = vsel %vm61, %v60, 0
    %68 = vmatprep.subr.mxu0 0.0
    %v69 = vand.u32 %v66, 4294901760
    %70 = vmatpush1.xpose.msra.mxu0 %v69
    %71 = vmatprep.subr.mxu0 0.0
    %72 = vmatpush1.xpose.msra.mxu0 0.0
    %73 = vmatprep.subr.mxu0 0.0
    %74 = vmatpush1.xpose.msra.mxu0 0.0
    %75 = vmatprep.subr.mxu0 0.0
    %76 = vmatpush1.xpose.msra.mxu0 0.0
    %77 = vmatprep.subr.mxu0 0.0
    %78 = vmatpush1.xpose.msra.mxu0 0.0
    %79 = vmatprep.subr.mxu0 0.0
    %80 = vmatpush1.xpose.msra.mxu0 0.0
    %81 = vmatprep.subr.mxu0 0.0
    %82 = vmatpush1.xpose.msra.mxu0 0.0
    %83 = vmatprep.subr.mxu0 0.0
    %84 = vmatpush1.xpose.msra.mxu0 0.0
    %85 = vmatprep.subr.mxu0 0.0
    %86 = vmatpush1.xpose.msra.mxu0 0.0
    %87 = vmatprep.subr.mxu0 0.0
    %88 = vmatpush1.xpose.msra.mxu0 0.0
    %89 = vmatprep.subr.mxu0 0.0
    %90 = vmatpush1.xpose.msra.mxu0 0.0
    %91 = vmatprep.subr.mxu0 0.0
    %92 = vmatpush1.xpose.msra.mxu0 0.0
    %93 = vmatprep.subr.mxu0 0.0
    %94 = vmatpush1.xpose.msra.mxu0 0.0
    %95 = vmatprep.subr.mxu0 0.0
    %96 = vmatpush1.xpose.msra.mxu0 0.0
    %97 = vmatprep.subr.mxu0 0.0
    %98 = vmatpush1.xpose.msra.mxu0 0.0
    %99 = vmatprep.subr.mxu0 0.0
    %100 = vmatpush1.xpose.msra.mxu0 0.0
    %101 = vmatprep.subr.mxu0 0.0
    %102 = vmatpush1.xpose.msra.mxu0 0.0
    %103 = vmatprep.subr.mxu0 0.0
    %104 = vmatpush1.xpose.msra.mxu0 0.0
    %105 = vmatprep.subr.mxu0 0.0
    %106 = vmatpush1.xpose.msra.mxu0 0.0
    %107 = vmatprep.subr.mxu0 0.0
    %108 = vmatpush1.xpose.msra.mxu0 0.0
    %109 = vmatprep.subr.mxu0 0.0
    %110 = vmatpush1.xpose.msra.mxu0 0.0
    %111 = vmatprep.subr.mxu0 0.0
    %112 = vmatpush1.xpose.msra.mxu0 0.0
    %113 = vmatprep.subr.mxu0 0.0
    %114 = vmatpush1.xpose.msra.mxu0 0.0
    %115 = vmatprep.subr.mxu0 0.0
    %116 = vmatpush1.xpose.msra.mxu0 0.0
    %117 = vmatprep.subr.mxu0 0.0
    %118 = vmatpush1.xpose.msra.mxu0 0.0
    %119 = vmatprep.subr.mxu0 0.0
    %120 = vmatpush1.xpose.msra.mxu0 0.0
    %121 = vmatprep.subr.mxu0 0.0
    %122 = vmatpush1.xpose.msra.mxu0 0.0
    %123 = vmatprep.subr.mxu0 0.0
    %124 = vmatpush1.xpose.msra.mxu0 0.0
    %125 = vmatprep.subr.mxu0 0.0
    %126 = vmatpush1.xpose.msra.mxu0 0.0
    %127 = vmatprep.subr.mxu0 0.0
    %128 = vmatpush1.xpose.msra.mxu0 0.0
    %129 = vmatprep.subr.mxu0 0.0
    %130 = vmatpush1.xpose.msra.mxu0 0.0
    %131 = vmatprep.subr.mxu0 0.0
    %132 = vmatpush1.xpose.msra.mxu0 0.0
    %133 = vmatprep.mubr.f32.mxu0 0.0
    %v134 = vand.u32 %v63, 4294901760
    %v135 = vsub.f32 %v63, %v134
    %v136 = vand.u32 %v135, 4294901760
    %v137 = vsub.f32 %v135, %v136
    %v138 = vand.u32 %v137, 4294901760
    %139 = vmatmul.mubr.f32.gmra.mrb[0].mxu0 %v138
    %v140 = vpop.f32.mrb[0].mxu0
    %v141 = vadd.f32 0.0, %v140
    %v142 = vpop.f32.mrb[0].mxu0
    %143 = vdwg.mxu0
    %144 = vmatprep.subr.mxu0 0.0
    %v145 = vand.u32 %v66, 4294901760
    %v146 = vsub.f32 %v66, %v145
    %v147 = vand.u32 %v146, 4294901760
    %v148 = vsub.f32 %v146, %v147
    %v149 = vand.u32 %v148, 4294901760
    %150 = vmatpush1.xpose.msra.mxu0 %v149
    %151 = vmatprep.subr.mxu0 0.0
    %152 = vmatpush1.xpose.msra.mxu0 0.0
    %153 = vmatprep.subr.mxu0 0.0
    %154 = vmatpush1.xpose.msra.mxu0 0.0
    %155 = vmatprep.subr.mxu0 0.0
    %156 = vmatpush1.xpose.msra.mxu0 0.0
    %157 = vmatprep.subr.mxu0 0.0
    %158 = vmatpush1.xpose.msra.mxu0 0.0
    %159 = vmatprep.subr.mxu0 0.0
    %160 = vmatpush1.xpose.msra.mxu0 0.0
    %161 = vmatprep.subr.mxu0 0.0
    %162 = vmatpush1.xpose.msra.mxu0 0.0
    %163 = vmatprep.subr.mxu0 0.0
    %164 = vmatpush1.xpose.msra.mxu0 0.0
    %165 = vmatprep.subr.mxu0 0.0
    %166 = vmatpush1.xpose.msra.mxu0 0.0
    %167 = vmatprep.subr.mxu0 0.0
    %168 = vmatpush1.xpose.msra.mxu0 0.0
    %169 = vmatprep.subr.mxu0 0.0
    %170 = vmatpush1.xpose.msra.mxu0 0.0
    %171 = vmatprep.subr.mxu0 0.0
    %172 = vmatpush1.xpose.msra.mxu0 0.0
    %173 = vmatprep.subr.mxu0 0.0
    %174 = vmatpush1.xpose.msra.mxu0 0.0
    %175 = vmatprep.subr.mxu0 0.0
    %176 = vmatpush1.xpose.msra.mxu0 0.0
    %177 = vmatprep.subr.mxu0 0.0
    %178 = vmatpush1.xpose.msra.mxu0 0.0
    %179 = vmatprep.subr.mxu0 0.0
    %180 = vmatpush1.xpose.msra.mxu0 0.0
    %181 = vmatprep.subr.mxu0 0.0
    %182 = vmatpush1.xpose.msra.mxu0 0.0
    %183 = vmatprep.subr.mxu0 0.0
    %184 = vmatpush1.xpose.msra.mxu0 0.0
    %185 = vmatprep.subr.mxu0 0.0
    %186 = vmatpush1.xpose.msra.mxu0 0.0
    %187 = vmatprep.subr.mxu0 0.0
    %188 = vmatpush1.xpose.msra.mxu0 0.0
    %189 = vmatprep.subr.mxu0 0.0
    %190 = vmatpush1.xpose.msra.mxu0 0.0
    %191 = vmatprep.subr.mxu0 0.0
    %192 = vmatpush1.xpose.msra.mxu0 0.0
    %193 = vmatprep.subr.mxu0 0.0
    %194 = vmatpush1.xpose.msra.mxu0 0.0
    %195 = vmatprep.subr.mxu0 0.0
    %196 = vmatpush1.xpose.msra.mxu0 0.0
    %197 = vmatprep.subr.mxu0 0.0
    %198 = vmatpush1.xpose.msra.mxu0 0.0
    %199 = vmatprep.subr.mxu0 0.0
    %200 = vmatpush1.xpose.msra.mxu0 0.0
    %201 = vmatprep.subr.mxu0 0.0
    %202 = vmatpush1.xpose.msra.mxu0 0.0
    %203 = vmatprep.subr.mxu0 0.0
    %204 = vmatpush1.xpose.msra.mxu0 0.0
    %205 = vmatprep.subr.mxu0 0.0
    %206 = vmatpush1.xpose.msra.mxu0 0.0
    %207 = vmatprep.subr.mxu0 0.0
    %208 = vmatpush1.xpose.msra.mxu0 0.0
    %209 = vmatprep.subr.mxu0 0.0
    %210 = vmatpush1.xpose.msra.mxu0 0.0
    %211 = vmatprep.subr.mxu0 0.0
    %212 = vmatpush1.xpose.msra.mxu0 0.0
    %213 = vmatprep.mubr.f32.mxu0 0.0
    %v214 = vand.u32 %v63, 4294901760
    %215 = vmatmul.mubr.f32.gmra.mrb[0].mxu0 %v214
    %v216 = vpop.f32.mrb[0].mxu0
    %v217 = vadd.f32 %v141, %v216
    %v218 = vpop.f32.mrb[0].mxu0
    %219 = vdwg.mxu0
    %220 = vmatprep.subr.mxu0 0.0
    %v221 = vand.u32 %v66, 4294901760
    %v222 = vsub.f32 %v66, %v221
    %223 = vmatpush1.xpose.msra.mxu0 %v222
    %224 = vmatprep.subr.mxu0 0.0
    %225 = vmatpush1.xpose.msra.mxu0 0.0
    %226 = vmatprep.subr.mxu0 0.0
    %227 = vmatpush1.xpose.msra.mxu0 0.0
    %228 = vmatprep.subr.mxu0 0.0
    %229 = vmatpush1.xpose.msra.mxu0 0.0
    %230 = vmatprep.subr.mxu0 0.0
    %231 = vmatpush1.xpose.msra.mxu0 0.0
    %232 = vmatprep.subr.mxu0 0.0
    %233 = vmatpush1.xpose.msra.mxu0 0.0
    %234 = vmatprep.subr.mxu0 0.0
    %235 = vmatpush1.xpose.msra.mxu0 0.0
    %236 = vmatprep.subr.mxu0 0.0
    %237 = vmatpush1.xpose.msra.mxu0 0.0
    %238 = vmatprep.subr.mxu0 0.0
    %239 = vmatpush1.xpose.msra.mxu0 0.0
    %240 = vmatprep.subr.mxu0 0.0
    %241 = vmatpush1.xpose.msra.mxu0 0.0
    %242 = vmatprep.subr.mxu0 0.0
    %243 = vmatpush1.xpose.msra.mxu0 0.0
    %244 = vmatprep.subr.mxu0 0.0
    %245 = vmatpush1.xpose.msra.mxu0 0.0
    %246 = vmatprep.subr.mxu0 0.0
    %247 = vmatpush1.xpose.msra.mxu0 0.0
    %248 = vmatprep.subr.mxu0 0.0
    %249 = vmatpush1.xpose.msra.mxu0 0.0
    %250 = vmatprep.subr.mxu0 0.0
    %251 = vmatpush1.xpose.msra.mxu0 0.0
    %252 = vmatprep.subr.mxu0 0.0
    %253 = vmatpush1.xpose.msra.mxu0 0.0
    %254 = vmatprep.subr.mxu0 0.0
    %255 = vmatpush1.xpose.msra.mxu0 0.0
    %256 = vmatprep.subr.mxu0 0.0
    %257 = vmatpush1.xpose.msra.mxu0 0.0
    %258 = vmatprep.subr.mxu0 0.0
    %259 = vmatpush1.xpose.msra.mxu0 0.0
    %260 = vmatprep.subr.mxu0 0.0
    %261 = vmatpush1.xpose.msra.mxu0 0.0
    %262 = vmatprep.subr.mxu0 0.0
    %263 = vmatpush1.xpose.msra.mxu0 0.0
    %264 = vmatprep.subr.mxu0 0.0
    %265 = vmatpush1.xpose.msra.mxu0 0.0
    %266 = vmatprep.subr.mxu0 0.0
    %267 = vmatpush1.xpose.msra.mxu0 0.0
    %268 = vmatprep.subr.mxu0 0.0
    %269 = vmatpush1.xpose.msra.mxu0 0.0
    %270 = vmatprep.subr.mxu0 0.0
    %271 = vmatpush1.xpose.msra.mxu0 0.0
    %272 = vmatprep.subr.mxu0 0.0
    %273 = vmatpush1.xpose.msra.mxu0 0.0
    %274 = vmatprep.subr.mxu0 0.0
    %275 = vmatpush1.xpose.msra.mxu0 0.0
    %276 = vmatprep.subr.mxu0 0.0
    %277 = vmatpush1.xpose.msra.mxu0 0.0
    %278 = vmatprep.subr.mxu0 0.0
    %279 = vmatpush1.xpose.msra.mxu0 0.0
    %280 = vmatprep.subr.mxu0 0.0
    %281 = vmatpush1.xpose.msra.mxu0 0.0
    %282 = vmatprep.subr.mxu0 0.0
    %283 = vmatpush1.xpose.msra.mxu0 0.0
    %284 = vmatprep.subr.mxu0 0.0
    %285 = vmatpush1.xpose.msra.mxu0 0.0
    %286 = vmatprep.mubr.f32.mxu0 0.0
    %v287 = vand.u32 %v63, 4294901760
    %v288 = vsub.f32 %v63, %v287
    %289 = vmatmul.mubr.f32.gmra.mrb[0].mxu0 %v288
    %v290 = vpop.f32.mrb[0].mxu0
    %v291 = vadd.f32 %v217, %v290
    %v292 = vpop.f32.mrb[0].mxu0
    %293 = vdwg.mxu0
    %294 = vmatprep.subr.mxu0 0.0
    %v295 = vand.u32 %v66, 4294901760
    %296 = vmatpush1.xpose.msra.mxu0 %v295
    %297 = vmatprep.subr.mxu0 0.0
    %298 = vmatpush1.xpose.msra.mxu0 0.0
    %299 = vmatprep.subr.mxu0 0.0
    %300 = vmatpush1.xpose.msra.mxu0 0.0
    %301 = vmatprep.subr.mxu0 0.0
    %302 = vmatpush1.xpose.msra.mxu0 0.0
    %303 = vmatprep.subr.mxu0 0.0
    %304 = vmatpush1.xpose.msra.mxu0 0.0
    %305 = vmatprep.subr.mxu0 0.0
    %306 = vmatpush1.xpose.msra.mxu0 0.0
    %307 = vmatprep.subr.mxu0 0.0
    %308 = vmatpush1.xpose.msra.mxu0 0.0
    %309 = vmatprep.subr.mxu0 0.0
    %310 = vmatpush1.xpose.msra.mxu0 0.0
    %311 = vmatprep.subr.mxu0 0.0
    %312 = vmatpush1.xpose.msra.mxu0 0.0
    %313 = vmatprep.subr.mxu0 0.0
    %314 = vmatpush1.xpose.msra.mxu0 0.0
    %315 = vmatprep.subr.mxu0 0.0
    %316 = vmatpush1.xpose.msra.mxu0 0.0
    %317 = vmatprep.subr.mxu0 0.0
    %318 = vmatpush1.xpose.msra.mxu0 0.0
    %319 = vmatprep.subr.mxu0 0.0
    %320 = vmatpush1.xpose.msra.mxu0 0.0
    %321 = vmatprep.subr.mxu0 0.0
    %322 = vmatpush1.xpose.msra.mxu0 0.0
    %323 = vmatprep.subr.mxu0 0.0
    %324 = vmatpush1.xpose.msra.mxu0 0.0
    %325 = vmatprep.subr.mxu0 0.0
    %326 = vmatpush1.xpose.msra.mxu0 0.0
    %327 = vmatprep.subr.mxu0 0.0
    %328 = vmatpush1.xpose.msra.mxu0 0.0
    %329 = vmatprep.subr.mxu0 0.0
    %330 = vmatpush1.xpose.msra.mxu0 0.0
    %331 = vmatprep.subr.mxu0 0.0
    %332 = vmatpush1.xpose.msra.mxu0 0.0
    %333 = vmatprep.subr.mxu0 0.0
    %334 = vmatpush1.xpose.msra.mxu0 0.0
    %335 = vmatprep.subr.mxu0 0.0
    %336 = vmatpush1.xpose.msra.mxu0 0.0
    %337 = vmatprep.subr.mxu0 0.0
    %338 = vmatpush1.xpose.msra.mxu0 0.0
    %339 = vmatprep.subr.mxu0 0.0
    %340 = vmatpush1.xpose.msra.mxu0 0.0
    %341 = vmatprep.subr.mxu0 0.0
    %342 = vmatpush1.xpose.msra.mxu0 0.0
    %343 = vmatprep.subr.mxu0 0.0
    %344 = vmatpush1.xpose.msra.mxu0 0.0
    %345 = vmatprep.subr.mxu0 0.0
    %346 = vmatpush1.xpose.msra.mxu0 0.0
    %347 = vmatprep.subr.mxu0 0.0
    %348 = vmatpush1.xpose.msra.mxu0 0.0
    %349 = vmatprep.subr.mxu0 0.0
    %350 = vmatpush1.xpose.msra.mxu0 0.0
    %351 = vmatprep.subr.mxu0 0.0
    %352 = vmatpush1.xpose.msra.mxu0 0.0
    %353 = vmatprep.subr.mxu0 0.0
    %354 = vmatpush1.xpose.msra.mxu0 0.0
    %355 = vmatprep.subr.mxu0 0.0
    %356 = vmatpush1.xpose.msra.mxu0 0.0
    %357 = vmatprep.subr.mxu0 0.0
    %358 = vmatpush1.xpose.msra.mxu0 0.0
    %359 = vmatprep.mubr.f32.mxu0 0.0
    %v360 = vand.u32 %v63, 4294901760
    %v361 = vsub.f32 %v63, %v360
    %v362 = vand.u32 %v361, 4294901760
    %363 = vmatmul.mubr.f32.gmra.mrb[0].mxu0 %v362
    %v364 = vpop.f32.mrb[0].mxu0
    %v365 = vadd.f32 %v291, %v364
    %v366 = vpop.f32.mrb[0].mxu0
    %367 = vdwg.mxu0
    %368 = vmatprep.subr.mxu0 0.0
    %v369 = vand.u32 %v66, 4294901760
    %v370 = vsub.f32 %v66, %v369
    %v371 = vand.u32 %v370, 4294901760
    %372 = vmatpush1.xpose.msra.mxu0 %v371
    %373 = vmatprep.subr.mxu0 0.0
    %374 = vmatpush1.xpose.msra.mxu0 0.0
    %375 = vmatprep.subr.mxu0 0.0
    %376 = vmatpush1.xpose.msra.mxu0 0.0
    %377 = vmatprep.subr.mxu0 0.0
    %378 = vmatpush1.xpose.msra.mxu0 0.0
    %379 = vmatprep.subr.mxu0 0.0
    %380 = vmatpush1.xpose.msra.mxu0 0.0
    %381 = vmatprep.subr.mxu0 0.0
    %382 = vmatpush1.xpose.msra.mxu0 0.0
    %383 = vmatprep.subr.mxu0 0.0
    %384 = vmatpush1.xpose.msra.mxu0 0.0
    %385 = vmatprep.subr.mxu0 0.0
    %386 = vmatpush1.xpose.msra.mxu0 0.0
    %387 = vmatprep.subr.mxu0 0.0
    %388 = vmatpush1.xpose.msra.mxu0 0.0
    %389 = vmatprep.subr.mxu0 0.0
    %390 = vmatpush1.xpose.msra.mxu0 0.0
    %391 = vmatprep.subr.mxu0 0.0
    %392 = vmatpush1.xpose.msra.mxu0 0.0
    %393 = vmatprep.subr.mxu0 0.0
    %394 = vmatpush1.xpose.msra.mxu0 0.0
    %395 = vmatprep.subr.mxu0 0.0
    %396 = vmatpush1.xpose.msra.mxu0 0.0
    %397 = vmatprep.subr.mxu0 0.0
    %398 = vmatpush1.xpose.msra.mxu0 0.0
    %399 = vmatprep.subr.mxu0 0.0
    %400 = vmatpush1.xpose.msra.mxu0 0.0
    %401 = vmatprep.subr.mxu0 0.0
    %402 = vmatpush1.xpose.msra.mxu0 0.0
    %403 = vmatprep.subr.mxu0 0.0
    %404 = vmatpush1.xpose.msra.mxu0 0.0
    %405 = vmatprep.subr.mxu0 0.0
    %406 = vmatpush1.xpose.msra.mxu0 0.0
    %407 = vmatprep.subr.mxu0 0.0
    %408 = vmatpush1.xpose.msra.mxu0 0.0
    %409 = vmatprep.subr.mxu0 0.0
    %410 = vmatpush1.xpose.msra.mxu0 0.0
    %411 = vmatprep.subr.mxu0 0.0
    %412 = vmatpush1.xpose.msra.mxu0 0.0
    %413 = vmatprep.subr.mxu0 0.0
    %414 = vmatpush1.xpose.msra.mxu0 0.0
    %415 = vmatprep.subr.mxu0 0.0
    %416 = vmatpush1.xpose.msra.mxu0 0.0
    %417 = vmatprep.subr.mxu0 0.0
    %418 = vmatpush1.xpose.msra.mxu0 0.0
    %419 = vmatprep.subr.mxu0 0.0
    %420 = vmatpush1.xpose.msra.mxu0 0.0
    %421 = vmatprep.subr.mxu0 0.0
    %422 = vmatpush1.xpose.msra.mxu0 0.0
    %423 = vmatprep.subr.mxu0 0.0
    %424 = vmatpush1.xpose.msra.mxu0 0.0
    %425 = vmatprep.subr.mxu0 0.0
    %426 = vmatpush1.xpose.msra.mxu0 0.0
    %427 = vmatprep.subr.mxu0 0.0
    %428 = vmatpush1.xpose.msra.mxu0 0.0
    %429 = vmatprep.subr.mxu0 0.0
    %430 = vmatpush1.xpose.msra.mxu0 0.0
    %431 = vmatprep.subr.mxu0 0.0
    %432 = vmatpush1.xpose.msra.mxu0 0.0
    %433 = vmatprep.subr.mxu0 0.0
    %434 = vmatpush1.xpose.msra.mxu0 0.0
    %435 = vmatprep.mubr.f32.mxu0 0.0
    %v436 = vand.u32 %v63, 4294901760
    %437 = vmatmul.mubr.f32.gmra.mrb[0].mxu0 %v436
    %v438 = vpop.f32.mrb[0].mxu0
    %v439 = vadd.f32 %v365, %v438
    %v440 = vpop.f32.mrb[0].mxu0
    %441 = vdwg.mxu0
    %442 = vmatprep.subr.mxu0 0.0
    %v443 = vand.u32 %v66, 4294901760
    %444 = vmatpush1.xpose.msra.mxu0 %v443
    %445 = vmatprep.subr.mxu0 0.0
    %446 = vmatpush1.xpose.msra.mxu0 0.0
    %447 = vmatprep.subr.mxu0 0.0
    %448 = vmatpush1.xpose.msra.mxu0 0.0
    %449 = vmatprep.subr.mxu0 0.0
    %450 = vmatpush1.xpose.msra.mxu0 0.0
    %451 = vmatprep.subr.mxu0 0.0
    %452 = vmatpush1.xpose.msra.mxu0 0.0
    %453 = vmatprep.subr.mxu0 0.0
    %454 = vmatpush1.xpose.msra.mxu0 0.0
    %455 = vmatprep.subr.mxu0 0.0
    %456 = vmatpush1.xpose.msra.mxu0 0.0
    %457 = vmatprep.subr.mxu0 0.0
    %458 = vmatpush1.xpose.msra.mxu0 0.0
    %459 = vmatprep.subr.mxu0 0.0
    %460 = vmatpush1.xpose.msra.mxu0 0.0
    %461 = vmatprep.subr.mxu0 0.0
    %462 = vmatpush1.xpose.msra.mxu0 0.0
    %463 = vmatprep.subr.mxu0 0.0
    %464 = vmatpush1.xpose.msra.mxu0 0.0
    %465 = vmatprep.subr.mxu0 0.0
    %466 = vmatpush1.xpose.msra.mxu0 0.0
    %467 = vmatprep.subr.mxu0 0.0
    %468 = vmatpush1.xpose.msra.mxu0 0.0
    %469 = vmatprep.subr.mxu0 0.0
    %470 = vmatpush1.xpose.msra.mxu0 0.0
    %471 = vmatprep.subr.mxu0 0.0
    %472 = vmatpush1.xpose.msra.mxu0 0.0
    %473 = vmatprep.subr.mxu0 0.0
    %474 = vmatpush1.xpose.msra.mxu0 0.0
    %475 = vmatprep.subr.mxu0 0.0
    %476 = vmatpush1.xpose.msra.mxu0 0.0
    %477 = vmatprep.subr.mxu0 0.0
    %478 = vmatpush1.xpose.msra.mxu0 0.0
    %479 = vmatprep.subr.mxu0 0.0
    %480 = vmatpush1.xpose.msra.mxu0 0.0
    %481 = vmatprep.subr.mxu0 0.0
    %482 = vmatpush1.xpose.msra.mxu0 0.0
    %483 = vmatprep.subr.mxu0 0.0
    %484 = vmatpush1.xpose.msra.mxu0 0.0
    %485 = vmatprep.subr.mxu0 0.0
    %486 = vmatpush1.xpose.msra.mxu0 0.0
    %487 = vmatprep.subr.mxu0 0.0
    %488 = vmatpush1.xpose.msra.mxu0 0.0
    %489 = vmatprep.subr.mxu0 0.0
    %490 = vmatpush1.xpose.msra.mxu0 0.0
    %491 = vmatprep.subr.mxu0 0.0
    %492 = vmatpush1.xpose.msra.mxu0 0.0
    %493 = vmatprep.subr.mxu0 0.0
    %494 = vmatpush1.xpose.msra.mxu0 0.0
    %495 = vmatprep.subr.mxu0 0.0
    %496 = vmatpush1.xpose.msra.mxu0 0.0
    %497 = vmatprep.subr.mxu0 0.0
    %498 = vmatpush1.xpose.msra.mxu0 0.0
    %499 = vmatprep.subr.mxu0 0.0
    %500 = vmatpush1.xpose.msra.mxu0 0.0
    %501 = vmatprep.subr.mxu0 0.0
    %502 = vmatpush1.xpose.msra.mxu0 0.0
    %503 = vmatprep.subr.mxu0 0.0
    %504 = vmatpush1.xpose.msra.mxu0 0.0
    %505 = vmatprep.subr.mxu0 0.0
    %506 = vmatpush1.xpose.msra.mxu0 0.0
    %507 = vmatprep.mubr.f32.mxu0 0.0
    %v508 = vand.u32 %v63, 4294901760
    %509 = vmatmul.mubr.f32.gmra.mrb[0].mxu0 %v508
    %v510 = vpop.f32.mrb[0].mxu0
    %v511 = vadd.f32 %v439, %v510
    %v512 = vpop.f32.mrb[0].mxu0
    %513 = vdwg.mxu0
    %v514 = vmul.f32 %v59, %v59
    %v516 = vsel %vm61, %v514, 0
    %518 = vmatprep.subr.mxu0 0.0
    %v519 = vand.u32 %v516, 4294901760
    %520 = vmatpush1.xpose.msra.mxu0 %v519
    %521 = vmatprep.subr.mxu0 0.0
    %522 = vmatpush1.xpose.msra.mxu0 0.0
    %523 = vmatprep.subr.mxu0 0.0
    %524 = vmatpush1.xpose.msra.mxu0 0.0
    %525 = vmatprep.subr.mxu0 0.0
    %526 = vmatpush1.xpose.msra.mxu0 0.0
    %527 = vmatprep.subr.mxu0 0.0
    %528 = vmatpush1.xpose.msra.mxu0 0.0
    %529 = vmatprep.subr.mxu0 0.0
    %530 = vmatpush1.xpose.msra.mxu0 0.0
    %531 = vmatprep.subr.mxu0 0.0
    %532 = vmatpush1.xpose.msra.mxu0 0.0
    %533 = vmatprep.subr.mxu0 0.0
    %534 = vmatpush1.xpose.msra.mxu0 0.0
    %535 = vmatprep.subr.mxu0 0.0
    %536 = vmatpush1.xpose.msra.mxu0 0.0
    %537 = vmatprep.subr.mxu0 0.0
    %538 = vmatpush1.xpose.msra.mxu0 0.0
    %539 = vmatprep.subr.mxu0 0.0
    %540 = vmatpush1.xpose.msra.mxu0 0.0
    %541 = vmatprep.subr.mxu0 0.0
    %542 = vmatpush1.xpose.msra.mxu0 0.0
    %543 = vmatprep.subr.mxu0 0.0
    %544 = vmatpush1.xpose.msra.mxu0 0.0
    %545 = vmatprep.subr.mxu0 0.0
    %546 = vmatpush1.xpose.msra.mxu0 0.0
    %547 = vmatprep.subr.mxu0 0.0
    %548 = vmatpush1.xpose.msra.mxu0 0.0
    %549 = vmatprep.subr.mxu0 0.0
    %550 = vmatpush1.xpose.msra.mxu0 0.0
    %551 = vmatprep.subr.mxu0 0.0
    %552 = vmatpush1.xpose.msra.mxu0 0.0
    %553 = vmatprep.subr.mxu0 0.0
    %554 = vmatpush1.xpose.msra.mxu0 0.0
    %555 = vmatprep.subr.mxu0 0.0
    %556 = vmatpush1.xpose.msra.mxu0 0.0
    %557 = vmatprep.subr.mxu0 0.0
    %558 = vmatpush1.xpose.msra.mxu0 0.0
    %559 = vmatprep.subr.mxu0 0.0
    %560 = vmatpush1.xpose.msra.mxu0 0.0
    %561 = vmatprep.subr.mxu0 0.0
    %562 = vmatpush1.xpose.msra.mxu0 0.0
    %563 = vmatprep.subr.mxu0 0.0
    %564 = vmatpush1.xpose.msra.mxu0 0.0
    %565 = vmatprep.subr.mxu0 0.0
    %566 = vmatpush1.xpose.msra.mxu0 0.0
    %567 = vmatprep.subr.mxu0 0.0
    %568 = vmatpush1.xpose.msra.mxu0 0.0
    %569 = vmatprep.subr.mxu0 0.0
    %570 = vmatpush1.xpose.msra.mxu0 0.0
    %571 = vmatprep.subr.mxu0 0.0
    %572 = vmatpush1.xpose.msra.mxu0 0.0
    %573 = vmatprep.subr.mxu0 0.0
    %574 = vmatpush1.xpose.msra.mxu0 0.0
    %575 = vmatprep.subr.mxu0 0.0
    %576 = vmatpush1.xpose.msra.mxu0 0.0
    %577 = vmatprep.subr.mxu0 0.0
    %578 = vmatpush1.xpose.msra.mxu0 0.0
    %579 = vmatprep.subr.mxu0 0.0
    %580 = vmatpush1.xpose.msra.mxu0 0.0
    %581 = vmatprep.subr.mxu0 0.0
    %582 = vmatpush1.xpose.msra.mxu0 0.0
    %583 = vmatprep.mubr.f32.mxu0 0.0
    %v584 = vand.u32 %v63, 4294901760
    %v585 = vsub.f32 %v63, %v584
    %v586 = vand.u32 %v585, 4294901760
    %v587 = vsub.f32 %v585, %v586
    %v588 = vand.u32 %v587, 4294901760
    %589 = vmatmul.mubr.f32.gmra.mrb[0].mxu0 %v588
    %v590 = vpop.f32.mrb[0].mxu0
    %v591 = vadd.f32 0.0, %v590
    %v592 = vpop.f32.mrb[0].mxu0
    %593 = vdwg.mxu0
    %594 = vmatprep.subr.mxu0 0.0
    %v595 = vand.u32 %v516, 4294901760
    %v596 = vsub.f32 %v516, %v595
    %v597 = vand.u32 %v596, 4294901760
    %v598 = vsub.f32 %v596, %v597
    %v599 = vand.u32 %v598, 4294901760
    %600 = vmatpush1.xpose.msra.mxu0 %v599
    %601 = vmatprep.subr.mxu0 0.0
    %602 = vmatpush1.xpose.msra.mxu0 0.0
    %603 = vmatprep.subr.mxu0 0.0
    %604 = vmatpush1.xpose.msra.mxu0 0.0
    %605 = vmatprep.subr.mxu0 0.0
    %606 = vmatpush1.xpose.msra.mxu0 0.0
    %607 = vmatprep.subr.mxu0 0.0
    %608 = vmatpush1.xpose.msra.mxu0 0.0
    %609 = vmatprep.subr.mxu0 0.0
    %610 = vmatpush1.xpose.msra.mxu0 0.0
    %611 = vmatprep.subr.mxu0 0.0
    %612 = vmatpush1.xpose.msra.mxu0 0.0
    %613 = vmatprep.subr.mxu0 0.0
    %614 = vmatpush1.xpose.msra.mxu0 0.0
    %615 = vmatprep.subr.mxu0 0.0
    %616 = vmatpush1.xpose.msra.mxu0 0.0
    %617 = vmatprep.subr.mxu0 0.0
    %618 = vmatpush1.xpose.msra.mxu0 0.0
    %619 = vmatprep.subr.mxu0 0.0
    %620 = vmatpush1.xpose.msra.mxu0 0.0
    %621 = vmatprep.subr.mxu0 0.0
    %622 = vmatpush1.xpose.msra.mxu0 0.0
    %623 = vmatprep.subr.mxu0 0.0
    %624 = vmatpush1.xpose.msra.mxu0 0.0
    %625 = vmatprep.subr.mxu0 0.0
    %626 = vmatpush1.xpose.msra.mxu0 0.0
    %627 = vmatprep.subr.mxu0 0.0
    %628 = vmatpush1.xpose.msra.mxu0 0.0
    %629 = vmatprep.subr.mxu0 0.0
    %630 = vmatpush1.xpose.msra.mxu0 0.0
    %631 = vmatprep.subr.mxu0 0.0
    %632 = vmatpush1.xpose.msra.mxu0 0.0
    %633 = vmatprep.subr.mxu0 0.0
    %634 = vmatpush1.xpose.msra.mxu0 0.0
    %635 = vmatprep.subr.mxu0 0.0
    %636 = vmatpush1.xpose.msra.mxu0 0.0
    %637 = vmatprep.subr.mxu0 0.0
    %638 = vmatpush1.xpose.msra.mxu0 0.0
    %639 = vmatprep.subr.mxu0 0.0
    %640 = vmatpush1.xpose.msra.mxu0 0.0
    %641 = vmatprep.subr.mxu0 0.0
    %642 = vmatpush1.xpose.msra.mxu0 0.0
    %643 = vmatprep.subr.mxu0 0.0
    %644 = vmatpush1.xpose.msra.mxu0 0.0
    %645 = vmatprep.subr.mxu0 0.0
    %646 = vmatpush1.xpose.msra.mxu0 0.0
    %647 = vmatprep.subr.mxu0 0.0
    %648 = vmatpush1.xpose.msra.mxu0 0.0
    %649 = vmatprep.subr.mxu0 0.0
    %650 = vmatpush1.xpose.msra.mxu0 0.0
    %651 = vmatprep.subr.mxu0 0.0
    %652 = vmatpush1.xpose.msra.mxu0 0.0
    %653 = vmatprep.subr.mxu0 0.0
    %654 = vmatpush1.xpose.msra.mxu0 0.0
    %655 = vmatprep.subr.mxu0 0.0
    %656 = vmatpush1.xpose.msra.mxu0 0.0
    %657 = vmatprep.subr.mxu0 0.0
    %658 = vmatpush1.xpose.msra.mxu0 0.0
    %659 = vmatprep.subr.mxu0 0.0
    %660 = vmatpush1.xpose.msra.mxu0 0.0
    %661 = vmatprep.subr.mxu0 0.0
    %662 = vmatpush1.xpose.msra.mxu0 0.0
    %663 = vmatprep.mubr.f32.mxu0 0.0
    %v664 = vand.u32 %v63, 4294901760
    %665 = vmatmul.mubr.f32.gmra.mrb[0].mxu0 %v664
    %v666 = vpop.f32.mrb[0].mxu0
    %v667 = vadd.f32 %v591, %v666
    %v668 = vpop.f32.mrb[0].mxu0
    %669 = vdwg.mxu0
    %670 = vmatprep.subr.mxu0 0.0
    %v671 = vand.u32 %v516, 4294901760
    %v672 = vsub.f32 %v516, %v671
    %673 = vmatpush1.xpose.msra.mxu0 %v672
    %674 = vmatprep.subr.mxu0 0.0
    %675 = vmatpush1.xpose.msra.mxu0 0.0
    %676 = vmatprep.subr.mxu0 0.0
    %677 = vmatpush1.xpose.msra.mxu0 0.0
    %678 = vmatprep.subr.mxu0 0.0
    %679 = vmatpush1.xpose.msra.mxu0 0.0
    %680 = vmatprep.subr.mxu0 0.0
    %681 = vmatpush1.xpose.msra.mxu0 0.0
    %682 = vmatprep.subr.mxu0 0.0
    %683 = vmatpush1.xpose.msra.mxu0 0.0
    %684 = vmatprep.subr.mxu0 0.0
    %685 = vmatpush1.xpose.msra.mxu0 0.0
    %686 = vmatprep.subr.mxu0 0.0
    %687 = vmatpush1.xpose.msra.mxu0 0.0
    %688 = vmatprep.subr.mxu0 0.0
    %689 = vmatpush1.xpose.msra.mxu0 0.0
    %690 = vmatprep.subr.mxu0 0.0
    %691 = vmatpush1.xpose.msra.mxu0 0.0
    %692 = vmatprep.subr.mxu0 0.0
    %693 = vmatpush1.xpose.msra.mxu0 0.0
    %694 = vmatprep.subr.mxu0 0.0
    %695 = vmatpush1.xpose.msra.mxu0 0.0
    %696 = vmatprep.subr.mxu0 0.0
    %697 = vmatpush1.xpose.msra.mxu0 0.0
    %698 = vmatprep.subr.mxu0 0.0
    %699 = vmatpush1.xpose.msra.mxu0 0.0
    %700 = vmatprep.subr.mxu0 0.0
    %701 = vmatpush1.xpose.msra.mxu0 0.0
    %702 = vmatprep.subr.mxu0 0.0
    %703 = vmatpush1.xpose.msra.mxu0 0.0
    %704 = vmatprep.subr.mxu0 0.0
    %705 = vmatpush1.xpose.msra.mxu0 0.0
    %706 = vmatprep.subr.mxu0 0.0
    %707 = vmatpush1.xpose.msra.mxu0 0.0
    %708 = vmatprep.subr.mxu0 0.0
    %709 = vmatpush1.xpose.msra.mxu0 0.0
    %710 = vmatprep.subr.mxu0 0.0
    %711 = vmatpush1.xpose.msra.mxu0 0.0
    %712 = vmatprep.subr.mxu0 0.0
    %713 = vmatpush1.xpose.msra.mxu0 0.0
    %714 = vmatprep.subr.mxu0 0.0
    %715 = vmatpush1.xpose.msra.mxu0 0.0
    %716 = vmatprep.subr.mxu0 0.0
    %717 = vmatpush1.xpose.msra.mxu0 0.0
    %718 = vmatprep.subr.mxu0 0.0
    %719 = vmatpush1.xpose.msra.mxu0 0.0
    %720 = vmatprep.subr.mxu0 0.0
    %721 = vmatpush1.xpose.msra.mxu0 0.0
    %722 = vmatprep.subr.mxu0 0.0
    %723 = vmatpush1.xpose.msra.mxu0 0.0
    %724 = vmatprep.subr.mxu0 0.0
    %725 = vmatpush1.xpose.msra.mxu0 0.0
    %726 = vmatprep.subr.mxu0 0.0
    %727 = vmatpush1.xpose.msra.mxu0 0.0
    %728 = vmatprep.subr.mxu0 0.0
    %729 = vmatpush1.xpose.msra.mxu0 0.0
    %730 = vmatprep.subr.mxu0 0.0
    %731 = vmatpush1.xpose.msra.mxu0 0.0
    %732 = vmatprep.subr.mxu0 0.0
    %733 = vmatpush1.xpose.msra.mxu0 0.0
    %734 = vmatprep.subr.mxu0 0.0
    %735 = vmatpush1.xpose.msra.mxu0 0.0
    %736 = vmatprep.mubr.f32.mxu0 0.0
    %v737 = vand.u32 %v63, 4294901760
    %v738 = vsub.f32 %v63, %v737
    %739 = vmatmul.mubr.f32.gmra.mrb[0].mxu0 %v738
    %v740 = vpop.f32.mrb[0].mxu0
    %v741 = vadd.f32 %v667, %v740
    %v742 = vpop.f32.mrb[0].mxu0
    %743 = vdwg.mxu0
    %744 = vmatprep.subr.mxu0 0.0
    %v745 = vand.u32 %v516, 4294901760
    %746 = vmatpush1.xpose.msra.mxu0 %v745
    %747 = vmatprep.subr.mxu0 0.0
    %748 = vmatpush1.xpose.msra.mxu0 0.0
    %749 = vmatprep.subr.mxu0 0.0
    %750 = vmatpush1.xpose.msra.mxu0 0.0
    %751 = vmatprep.subr.mxu0 0.0
    %752 = vmatpush1.xpose.msra.mxu0 0.0
    %753 = vmatprep.subr.mxu0 0.0
    %754 = vmatpush1.xpose.msra.mxu0 0.0
    %755 = vmatprep.subr.mxu0 0.0
    %756 = vmatpush1.xpose.msra.mxu0 0.0
    %757 = vmatprep.subr.mxu0 0.0
    %758 = vmatpush1.xpose.msra.mxu0 0.0
    %759 = vmatprep.subr.mxu0 0.0
    %760 = vmatpush1.xpose.msra.mxu0 0.0
    %761 = vmatprep.subr.mxu0 0.0
    %762 = vmatpush1.xpose.msra.mxu0 0.0
    %763 = vmatprep.subr.mxu0 0.0
    %764 = vmatpush1.xpose.msra.mxu0 0.0
    %765 = vmatprep.subr.mxu0 0.0
    %766 = vmatpush1.xpose.msra.mxu0 0.0
    %767 = vmatprep.subr.mxu0 0.0
    %768 = vmatpush1.xpose.msra.mxu0 0.0
    %769 = vmatprep.subr.mxu0 0.0
    %770 = vmatpush1.xpose.msra.mxu0 0.0
    %771 = vmatprep.subr.mxu0 0.0
    %772 = vmatpush1.xpose.msra.mxu0 0.0
    %773 = vmatprep.subr.mxu0 0.0
    %774 = vmatpush1.xpose.msra.mxu0 0.0
    %775 = vmatprep.subr.mxu0 0.0
    %776 = vmatpush1.xpose.msra.mxu0 0.0
    %777 = vmatprep.subr.mxu0 0.0
    %778 = vmatpush1.xpose.msra.mxu0 0.0
    %779 = vmatprep.subr.mxu0 0.0
    %780 = vmatpush1.xpose.msra.mxu0 0.0
    %781 = vmatprep.subr.mxu0 0.0
    %782 = vmatpush1.xpose.msra.mxu0 0.0
    %783 = vmatprep.subr.mxu0 0.0
    %784 = vmatpush1.xpose.msra.mxu0 0.0
    %785 = vmatprep.subr.mxu0 0.0
    %786 = vmatpush1.xpose.msra.mxu0 0.0
    %787 = vmatprep.subr.mxu0 0.0
    %788 = vmatpush1.xpose.msra.mxu0 0.0
    %789 = vmatprep.subr.mxu0 0.0
    %790 = vmatpush1.xpose.msra.mxu0 0.0
    %791 = vmatprep.subr.mxu0 0.0
    %792 = vmatpush1.xpose.msra.mxu0 0.0
    %793 = vmatprep.subr.mxu0 0.0
    %794 = vmatpush1.xpose.msra.mxu0 0.0
    %795 = vmatprep.subr.mxu0 0.0
    %796 = vmatpush1.xpose.msra.mxu0 0.0
    %797 = vmatprep.subr.mxu0 0.0
    %798 = vmatpush1.xpose.msra.mxu0 0.0
    %799 = vmatprep.subr.mxu0 0.0
    %800 = vmatpush1.xpose.msra.mxu0 0.0
    %801 = vmatprep.subr.mxu0 0.0
    %802 = vmatpush1.xpose.msra.mxu0 0.0
    %803 = vmatprep.subr.mxu0 0.0
    %804 = vmatpush1.xpose.msra.mxu0 0.0
    %805 = vmatprep.subr.mxu0 0.0
    %806 = vmatpush1.xpose.msra.mxu0 0.0
    %807 = vmatprep.subr.mxu0 0.0
    %808 = vmatpush1.xpose.msra.mxu0 0.0
    %809 = vmatprep.mubr.f32.mxu0 0.0
    %v810 = vand.u32 %v63, 4294901760
    %v811 = vsub.f32 %v63, %v810
    %v812 = vand.u32 %v811, 4294901760
    %813 = vmatmul.mubr.f32.gmra.mrb[0].mxu0 %v812
    %v814 = vpop.f32.mrb[0].mxu0
    %v815 = vadd.f32 %v741, %v814
    %v816 = vpop.f32.mrb[0].mxu0
    %817 = vdwg.mxu0
    %818 = vmatprep.subr.mxu0 0.0
    %v819 = vand.u32 %v516, 4294901760
    %v820 = vsub.f32 %v516, %v819
    %v821 = vand.u32 %v820, 4294901760
    %822 = vmatpush1.xpose.msra.mxu0 %v821
    %823 = vmatprep.subr.mxu0 0.0
    %824 = vmatpush1.xpose.msra.mxu0 0.0
    %825 = vmatprep.subr.mxu0 0.0
    %826 = vmatpush1.xpose.msra.mxu0 0.0
    %827 = vmatprep.subr.mxu0 0.0
    %828 = vmatpush1.xpose.msra.mxu0 0.0
    %829 = vmatprep.subr.mxu0 0.0
    %830 = vmatpush1.xpose.msra.mxu0 0.0
    %831 = vmatprep.subr.mxu0 0.0
    %832 = vmatpush1.xpose.msra.mxu0 0.0
    %833 = vmatprep.subr.mxu0 0.0
    %834 = vmatpush1.xpose.msra.mxu0 0.0
    %835 = vmatprep.subr.mxu0 0.0
    %836 = vmatpush1.xpose.msra.mxu0 0.0
    %837 = vmatprep.subr.mxu0 0.0
    %838 = vmatpush1.xpose.msra.mxu0 0.0
    %839 = vmatprep.subr.mxu0 0.0
    %840 = vmatpush1.xpose.msra.mxu0 0.0
    %841 = vmatprep.subr.mxu0 0.0
    %842 = vmatpush1.xpose.msra.mxu0 0.0
    %843 = vmatprep.subr.mxu0 0.0
    %844 = vmatpush1.xpose.msra.mxu0 0.0
    %845 = vmatprep.subr.mxu0 0.0
    %846 = vmatpush1.xpose.msra.mxu0 0.0
    %847 = vmatprep.subr.mxu0 0.0
    %848 = vmatpush1.xpose.msra.mxu0 0.0
    %849 = vmatprep.subr.mxu0 0.0
    %850 = vmatpush1.xpose.msra.mxu0 0.0
    %851 = vmatprep.subr.mxu0 0.0
    %852 = vmatpush1.xpose.msra.mxu0 0.0
    %853 = vmatprep.subr.mxu0 0.0
    %854 = vmatpush1.xpose.msra.mxu0 0.0
    %855 = vmatprep.subr.mxu0 0.0
    %856 = vmatpush1.xpose.msra.mxu0 0.0
    %857 = vmatprep.subr.mxu0 0.0
    %858 = vmatpush1.xpose.msra.mxu0 0.0
    %859 = vmatprep.subr.mxu0 0.0
    %860 = vmatpush1.xpose.msra.mxu0 0.0
    %861 = vmatprep.subr.mxu0 0.0
    %862 = vmatpush1.xpose.msra.mxu0 0.0
    %863 = vmatprep.subr.mxu0 0.0
    %864 = vmatpush1.xpose.msra.mxu0 0.0
    %865 = vmatprep.subr.mxu0 0.0
    %866 = vmatpush1.xpose.msra.mxu0 0.0
    %867 = vmatprep.subr.mxu0 0.0
    %868 = vmatpush1.xpose.msra.mxu0 0.0
    %869 = vmatprep.subr.mxu0 0.0
    %870 = vmatpush1.xpose.msra.mxu0 0.0
    %871 = vmatprep.subr.mxu0 0.0
    %872 = vmatpush1.xpose.msra.mxu0 0.0
    %873 = vmatprep.subr.mxu0 0.0
    %874 = vmatpush1.xpose.msra.mxu0 0.0
    %875 = vmatprep.subr.mxu0 0.0
    %876 = vmatpush1.xpose.msra.mxu0 0.0
    %877 = vmatprep.subr.mxu0 0.0
    %878 = vmatpush1.xpose.msra.mxu0 0.0
    %879 = vmatprep.subr.mxu0 0.0
    %880 = vmatpush1.xpose.msra.mxu0 0.0
    %881 = vmatprep.subr.mxu0 0.0
    %882 = vmatpush1.xpose.msra.mxu0 0.0
    %883 = vmatprep.subr.mxu0 0.0
    %884 = vmatpush1.xpose.msra.mxu0 0.0
    %885 = vmatprep.mubr.f32.mxu0 0.0
    %v886 = vand.u32 %v63, 4294901760
    %887 = vmatmul.mubr.f32.gmra.mrb[0].mxu0 %v886
    %v888 = vpop.f32.mrb[0].mxu0
    %v889 = vadd.f32 %v815, %v888
    %v890 = vpop.f32.mrb[0].mxu0
    %891 = vdwg.mxu0
    %892 = vmatprep.subr.mxu0 0.0
    %v893 = vand.u32 %v516, 4294901760
    %894 = vmatpush1.xpose.msra.mxu0 %v893
    %895 = vmatprep.subr.mxu0 0.0
    %896 = vmatpush1.xpose.msra.mxu0 0.0
    %897 = vmatprep.subr.mxu0 0.0
    %898 = vmatpush1.xpose.msra.mxu0 0.0
    %899 = vmatprep.subr.mxu0 0.0
    %900 = vmatpush1.xpose.msra.mxu0 0.0
    %901 = vmatprep.subr.mxu0 0.0
    %902 = vmatpush1.xpose.msra.mxu0 0.0
    %903 = vmatprep.subr.mxu0 0.0
    %904 = vmatpush1.xpose.msra.mxu0 0.0
    %905 = vmatprep.subr.mxu0 0.0
    %906 = vmatpush1.xpose.msra.mxu0 0.0
    %907 = vmatprep.subr.mxu0 0.0
    %908 = vmatpush1.xpose.msra.mxu0 0.0
    %909 = vmatprep.subr.mxu0 0.0
    %910 = vmatpush1.xpose.msra.mxu0 0.0
    %911 = vmatprep.subr.mxu0 0.0
    %912 = vmatpush1.xpose.msra.mxu0 0.0
    %913 = vmatprep.subr.mxu0 0.0
    %914 = vmatpush1.xpose.msra.mxu0 0.0
    %915 = vmatprep.subr.mxu0 0.0
    %916 = vmatpush1.xpose.msra.mxu0 0.0
    %917 = vmatprep.subr.mxu0 0.0
    %918 = vmatpush1.xpose.msra.mxu0 0.0
    %919 = vmatprep.subr.mxu0 0.0
    %920 = vmatpush1.xpose.msra.mxu0 0.0
    %921 = vmatprep.subr.mxu0 0.0
    %922 = vmatpush1.xpose.msra.mxu0 0.0
    %923 = vmatprep.subr.mxu0 0.0
    %924 = vmatpush1.xpose.msra.mxu0 0.0
    %925 = vmatprep.subr.mxu0 0.0
    %926 = vmatpush1.xpose.msra.mxu0 0.0
    %927 = vmatprep.subr.mxu0 0.0
    %928 = vmatpush1.xpose.msra.mxu0 0.0
    %929 = vmatprep.subr.mxu0 0.0
    %930 = vmatpush1.xpose.msra.mxu0 0.0
    %931 = vmatprep.subr.mxu0 0.0
    %932 = vmatpush1.xpose.msra.mxu0 0.0
    %933 = vmatprep.subr.mxu0 0.0
    %934 = vmatpush1.xpose.msra.mxu0 0.0
    %935 = vmatprep.subr.mxu0 0.0
    %936 = vmatpush1.xpose.msra.mxu0 0.0
    %937 = vmatprep.subr.mxu0 0.0
    %938 = vmatpush1.xpose.msra.mxu0 0.0
    %939 = vmatprep.subr.mxu0 0.0
    %940 = vmatpush1.xpose.msra.mxu0 0.0
    %941 = vmatprep.subr.mxu0 0.0
    %942 = vmatpush1.xpose.msra.mxu0 0.0
    %943 = vmatprep.subr.mxu0 0.0
    %944 = vmatpush1.xpose.msra.mxu0 0.0
    %945 = vmatprep.subr.mxu0 0.0
    %946 = vmatpush1.xpose.msra.mxu0 0.0
    %947 = vmatprep.subr.mxu0 0.0
    %948 = vmatpush1.xpose.msra.mxu0 0.0
    %949 = vmatprep.subr.mxu0 0.0
    %950 = vmatpush1.xpose.msra.mxu0 0.0
    %951 = vmatprep.subr.mxu0 0.0
    %952 = vmatpush1.xpose.msra.mxu0 0.0
    %953 = vmatprep.subr.mxu0 0.0
    %954 = vmatpush1.xpose.msra.mxu0 0.0
    %955 = vmatprep.subr.mxu0 0.0
    %956 = vmatpush1.xpose.msra.mxu0 0.0
    %957 = vmatprep.mubr.f32.mxu0 0.0
    %v958 = vand.u32 %v63, 4294901760
    %959 = vmatmul.mubr.f32.gmra.mrb[0].mxu0 %v958
    %v960 = vpop.f32.mrb[0].mxu0
    %v961 = vadd.f32 %v889, %v960
    %v962 = vpop.f32.mrb[0].mxu0
    %963 = vdwg.mxu0
    %p964 = scmp.eq.s32.totalorder 0, 0
    // Predicated region
    $region26: #{tpu_custom_call.1} parent=1 // pred_check
      %p965 = pneg %p964
    $region27: #{tpu_custom_call.1} parent=1 // pred_check_branch
      %967 = sbr.rel (%p965) target = $region29
    $region28: #{tpu_custom_call.1} parent=1 // pred_region
      %vm968 = vcmask 57344
      %969 = vst.msk [vmem:[#allocation8] sm:$0x1] %vm968, 0.0
      %970 = vst.msk [vmem:[#allocation9] sm:$0x1] %vm968, 0.0
    $region29: #{tpu_custom_call.1} parent=1 // pred_fallthru
      _
    %v971 = vld [vmem:[#allocation8] sm:$0x1]
    %v972 = vadd.f32 %v971, %v511
    %vm973 = vcmask 57344
    %974 = vst.msk [vmem:[#allocation8] sm:$0x1] %vm973, %v972
    %v975 = vld [vmem:[#allocation9] sm:$0x1]
    %v976 = vadd.f32 %v975, %v961
    %977 = vst.msk [vmem:[#allocation9] sm:$0x1] %vm973, %v976
    // Predicated region
    $region30: #{tpu_custom_call.1} parent=1 // pred_check
      _
    $region31: #{tpu_custom_call.1} parent=1 // pred_check_branch
      %979 = sbr.rel (0) target = $region33
    $region32: #{tpu_custom_call.1} parent=1 // pred_region
      %s981 = ssub.s32 16, 16
      %982 = vsyncadd [#allocation4], %s981
      %s984 = sshll.u32 [#allocation8], 4
      %s985 = int_to_ptr.vmem [resolvable:$true] %s984
      %987 = dma.vmem_to_hbm [thread:$0]  %s985, 16, %s3, [#allocation4]
    $region33: #{tpu_custom_call.1} parent=1 // pred_fallthru
      _
    // Predicated region
    $region34: #{tpu_custom_call.1} parent=1 // pred_check
      _
    $region35: #{tpu_custom_call.1} parent=1 // pred_check_branch
      %989 = sbr.rel (0) target = $region37
    $region36: #{tpu_custom_call.1} parent=1 // pred_region
      %s991 = ssub.s32 16, 16
      %992 = vsyncadd [#allocation10], %s991
      %s994 = sshll.u32 [#allocation9], 4
      %s995 = int_to_ptr.vmem [resolvable:$true] %s994
      %997 = dma.vmem_to_hbm [thread:$0]  %s995, 16, %s4, [#allocation10]
    $region37: #{tpu_custom_call.1} parent=1 // pred_fallthru
      _
    // Predicated region
    $region38: #{tpu_custom_call.1} parent=1 // pred_check
      _
    $region39: #{tpu_custom_call.1} parent=1 // pred_check_branch
      %999 = sbr.rel (0) target = $region41
    $region40: #{tpu_custom_call.1} parent=1 // pred_region
      %1000 = dma.done [#allocation4], 16
    $region41: #{tpu_custom_call.1} parent=1 // pred_fallthru
      _
    // Predicated region
    $region42: #{tpu_custom_call.1} parent=1 // pred_check
      _
    $region43: #{tpu_custom_call.1} parent=1 // pred_check_branch
      %1002 = sbr.rel (0) target = $region45
    $region44: #{tpu_custom_call.1} parent=1 // pred_region
      %1003 = dma.done [#allocation10], 16
    $region45: #{tpu_custom_call.1} parent=1 // pred_fallthru
      _
    %1004 = vsyncpa [#allocation3], 1
    %1005 = vsyncpa [#allocation6], 1
    %1006 = vsyncpa [#allocation4], 1
    %1007 = vsyncpa [#allocation10], 1

</llo_original>
